<compile_context>
chip_gen: v6e
topology: v6e:2x2x1
jax: 0.10.0
libtpu: 0.0.40
codegen_flags: <defaults>
</compile_context>

<pallas_src>
import functools

import jax
import jax.numpy as jnp
from jax import lax
from jax.experimental import pallas as pl
from jax.experimental.pallas import tpu as pltpu


def _dice_loss_kernel(d0_ref, d1_ref, lab_ref, out_ref,
                      inter0_acc, denom0_acc, inter1_acc, denom1_acc,
                      *, n_valid, hw, b_blk, chunk):
    # d0_ref/d1_ref/lab_ref: (b_blk, chunk) lane-dense blocks.
    # out_ref:               (8, 128) per-batch-block partial-sum tile.
    # *_acc:                 (b_blk, 1) f32 VMEM scratch accumulators.
    b = pl.program_id(0)
    c = pl.program_id(1)
    nc = pl.num_programs(1)

    @pl.when(c == 0)
    def _():
        inter0_acc[...] = jnp.zeros_like(inter0_acc)
        denom0_acc[...] = jnp.zeros_like(denom0_acc)
        inter1_acc[...] = jnp.zeros_like(inter1_acc)
        denom1_acc[...] = jnp.zeros_like(denom1_acc)

    d0 = d0_ref[...].astype(jnp.float32)      # data[i][0]
    d1 = d1_ref[...].astype(jnp.float32)      # data[i][1]
    lab = lab_ref[...].astype(jnp.float32)    # label[i]
    lab_inv = jnp.abs(1.0 - lab)              # abs(1 - label[i])

    # Spatial padding was zero-filled; zeros are harmless for d0/d1/lab sums,
    # but lab_inv would be 1 on padded lanes, so mask it (only when padded).
    if hw % chunk != 0:
        lane = c * chunk + lax.broadcasted_iota(jnp.int32, (b_blk, chunk), 1)
        lab_inv = jnp.where(lane < hw, lab_inv, 0.0)

    # Fused denominators: sum(m1)+sum(m2) == sum(m1+m2) (one XLU reduce each).
    inter0_acc[...] += jnp.sum(d0 * lab_inv, axis=-1, keepdims=True)
    denom0_acc[...] += jnp.sum(d0 + lab_inv, axis=-1, keepdims=True)
    inter1_acc[...] += jnp.sum(d1 * lab, axis=-1, keepdims=True)
    denom1_acc[...] += jnp.sum(d1 + lab, axis=-1, keepdims=True)

    @pl.when(c == nc - 1)
    def _():
        term0 = 1.0 - (2.0 * inter0_acc[...] + 1.0) / (denom0_acc[...] + 1.0)
        term1 = 1.0 - (2.0 * inter1_acc[...] + 1.0) / (denom1_acc[...] + 1.0)
        dice = term0 + term1                                   # (b_blk, 1)
        # Mask batch-padded samples (batch padded to a multiple of b_blk).
        sample_idx = b * b_blk + lax.broadcasted_iota(jnp.int32, (b_blk, 1), 0)
        dice = jnp.where(sample_idx < n_valid, dice, 0.0)
        block_sum = jnp.sum(dice, axis=(0, 1), keepdims=True)  # (1, 1)
        out_ref[...] = jnp.broadcast_to(block_sum, (8, 128))


def dice_loss(data, label, *, input_budget_bytes=None):
    """data: (N, 2, H, W); label: (N, H, W). Returns scalar float32 dice loss."""
    n, c, h, w = data.shape
    assert c == 2
    assert label.shape == (n, h, w)
    assert n > 0
    hw = h * w

    dib = jnp.dtype(data.dtype).itemsize
    lib = jnp.dtype(label.dtype).itemsize
    bpe = 2 * dib + lib      # bytes per spatial element across d0 + d1 + label

    # Generation-aware VMEM budgeting (v7x: 64 MiB/TC, v5e/v6e: 128 MiB).
    try:
        vmem_cap = int(pltpu.get_tpu_info().vmem_capacity_bytes)
    except Exception:  # conservative fallback (v7x per-TC size)
        vmem_cap = 64 * 1024 * 1024
    if input_budget_bytes is None:
        # Budget for the *double-buffered* input streams.
        input_budget_bytes = int(0.35 * vmem_cap)
    vmem_limit = min(int(0.75 * vmem_cap), 96 * 1024 * 1024)

    cdiv = lambda a, b: -(-a // b)
    hw128 = cdiv(hw, 128) * 128

    # Batch block size: multiple of 8 sublanes and >= 2 grid blocks (v7x 2-TC
    # "parallel" split) when the batch is large enough; otherwise a single
    # block covering the whole batch (block dim == full array dim).
    if n >= 16:
        rows_fit = max(1, input_budget_bytes // (2 * hw128 * bpe))
        b_blk = min(rows_fit, n // 2)
        b_blk = max(8, (b_blk // 8) * 8)
    else:
        b_blk = n
    n_pad = cdiv(n, b_blk) * b_blk
    num_blocks = n_pad // b_blk

    # Spatial chunk (lane axis, multiple of 128) sized from the real
    # double-buffered footprint: 2 buffers x b_blk x chunk x (d0 + d1 + label).
    max_chunk = (input_budget_bytes // (2 * b_blk * bpe)) // 128 * 128
    chunk = hw128 if max_chunk >= hw128 else max(128, max_chunk)
    hw_pad = cdiv(hw, chunk) * chunk
    num_chunks = hw_pad // chunk

    # Lane-dense 2-D layout; keep the HBM dtype narrow, cast to f32 in-kernel.
    d0 = data[:, 0].reshape(n, hw)
    d1 = data[:, 1].reshape(n, hw)
    lab = label.reshape(n, hw)
    if n_pad != n or hw_pad != hw:
        pad = ((0, n_pad - n), (0, hw_pad - hw))
        d0 = jnp.pad(d0, pad)
        d1 = jnp.pad(d1, pad)
        lab = jnp.pad(lab, pad)

    kernel = functools.partial(_dice_loss_kernel, n_valid=n, hw=hw,
                               b_blk=b_blk, chunk=chunk)

    out = pl.pallas_call(
        kernel,
        out_shape=jax.ShapeDtypeStruct((8 * num_blocks, 128), jnp.float32),
        grid_spec=pltpu.PrefetchScalarGridSpec(
            num_scalar_prefetch=0,
            grid=(num_blocks, num_chunks),
            in_specs=[
                pl.BlockSpec((b_blk, chunk), lambda b, c: (b, c)),
                pl.BlockSpec((b_blk, chunk), lambda b, c: (b, c)),
                pl.BlockSpec((b_blk, chunk), lambda b, c: (b, c)),
            ],
            out_specs=pl.BlockSpec((8, 128), lambda b, c: (b, 0)),
            scratch_shapes=[
                pltpu.VMEM((b_blk, 1), jnp.float32),
                pltpu.VMEM((b_blk, 1), jnp.float32),
                pltpu.VMEM((b_blk, 1), jnp.float32),
                pltpu.VMEM((b_blk, 1), jnp.float32),
            ],
        ),
        compiler_params=pltpu.CompilerParams(
            dimension_semantics=("parallel", "arbitrary"),
            vmem_limit_bytes=vmem_limit,
        ),
    )(d0, d1, lab)

    # One partial sum per batch block lives at row 8*i, column 0 of its tile.
    partials = out[0::8, 0]                   # (num_blocks,)
    return jnp.sum(partials) / float(n)       # static divisor; mean in wrapper


def dice_loss_ref(data, label):
    """Pure-JAX reference mirroring the PyTorch forward exactly."""
    n = data.shape[0]
    all_dice = 0.0
    for i in range(n):
        lab = label[i].astype(jnp.float32)
        lab_inv = jnp.abs(1.0 - lab)
        m1 = data[i, 0].reshape(-1).astype(jnp.float32)
        m2 = lab_inv.reshape(-1)
        m11 = data[i, 1].reshape(-1).astype(jnp.float32)
        m22 = lab.reshape(-1)
        dice = 0.0
        dice += 1.0 - (2.0 * jnp.sum(m1 * m2) + 1.0) / (jnp.sum(m1) + jnp.sum(m2) + 1.0)
        dice += 1.0 - (2.0 * jnp.sum(m11 * m22) + 1.0) / (jnp.sum(m11) + jnp.sum(m22) + 1.0)
        all_dice += dice
    return all_dice / n


if __name__ == "__main__":
    key = jax.random.PRNGKey(0)
    k1, k2, k3, k4 = jax.random.split(key, 4)

    # Case 1: small, lane-aligned spatial size (single block, single chunk).
    N, C, H, W = 2, 2, 16, 16
    data = jax.nn.softmax(jax.random.normal(k1, (N, C, H, W), jnp.float32), axis=1)
    label = (jax.random.uniform(k2, (N, H, W), jnp.float32) > 0.5).astype(jnp.float32)
    out = jax.block_until_ready(dice_loss(data, label))
    ref = jax.block_until_ready(dice_loss_ref(data, label))
    assert jnp.allclose(out, ref, rtol=1e-5, atol=1e-5), (out, ref)

    # Case 2: spatial size not a multiple of 128 (exercises the lane mask).
    N, H, W = 3, 20, 20
    data2 = jax.nn.softmax(jax.random.normal(k3, (N, 2, H, W), jnp.float32), axis=1)
    label2 = (jax.random.uniform(k4, (N, H, W), jnp.float32) > 0.5).astype(jnp.float32)
    out2 = jax.block_until_ready(dice_loss(data2, label2))
    ref2 = jax.block_until_ready(dice_loss_ref(data2, label2))
    assert jnp.allclose(out2, ref2, rtol=1e-5, atol=1e-5), (out2, ref2)

    # Case 3: tiny VMEM budget forces the multi-chunk accumulator path.
    out3 = jax.block_until_ready(dice_loss(data, label, input_budget_bytes=4096))
    assert jnp.allclose(out3, ref, rtol=1e-5, atol=1e-5), (out3, ref)

    print("KERNEL_OK")
</pallas_src>

<mosaic_0001>
module attributes {stable_mosaic.version = 11 : i64} {
  func.func @_dice_loss_kernel(%arg0: i32, %arg1: i32, %arg2: memref<2x256xf32, #tpu.memory_space<vmem>>, %arg3: memref<2x256xf32, #tpu.memory_space<vmem>>, %arg4: memref<2x256xf32, #tpu.memory_space<vmem>>, %arg5: memref<8x128xf32, #tpu.memory_space<vmem>>, %arg6: memref<2x1xf32, #tpu.memory_space<vmem>>, %arg7: memref<2x1xf32, #tpu.memory_space<vmem>>, %arg8: memref<2x1xf32, #tpu.memory_space<vmem>>, %arg9: memref<2x1xf32, #tpu.memory_space<vmem>>) attributes {dimension_semantics = [#tpu.dimension_semantics<parallel>, #tpu.dimension_semantics<arbitrary>], iteration_bounds = array<i64: 1, 1>, scalar_prefetch = 0 : i64, scratch_operands = 4 : i64, tpu.core_type = #tpu.core_type<tc>, window_params = [{transform_indices = @transform_0, window_bounds = array<i64: 2, 256>}, {transform_indices = @transform_1, window_bounds = array<i64: 2, 256>}, {transform_indices = @transform_2, window_bounds = array<i64: 2, 256>}, {transform_indices = @transform_3, window_bounds = array<i64: 8, 128>}]} {
    %c0_i32 = arith.constant 0 : i32
    %0 = arith.cmpi eq, %arg1, %c0_i32 : i32
    %1 = arith.extui %0 : i1 to i32
    %c0_i32_0 = arith.constant 0 : i32
    %2 = arith.cmpi ne, %1, %c0_i32_0 : i32
    scf.if %2 {
      %cst_28 = arith.constant 0.000000e+00 : f32
      %36 = vector.broadcast %cst_28 : f32 to vector<2x1xf32>
      %c0_29 = arith.constant 0 : index
      %c0_30 = arith.constant 0 : index
      %37 = vector.load %arg6[%c0_29, %c0_30] : memref<2x1xf32, #tpu.memory_space<vmem>>, vector<2x1xf32>
      tpu.vector_store %arg6[%c0_29, %c0_30], %36 {strides = array<i32>} : memref<2x1xf32, #tpu.memory_space<vmem>>, vector<2x1xf32>,
      %cst_31 = arith.constant 0.000000e+00 : f32
      %38 = vector.broadcast %cst_31 : f32 to vector<2x1xf32>
      %c0_32 = arith.constant 0 : index
      %c0_33 = arith.constant 0 : index
      %39 = vector.load %arg7[%c0_32, %c0_33] : memref<2x1xf32, #tpu.memory_space<vmem>>, vector<2x1xf32>
      tpu.vector_store %arg7[%c0_32, %c0_33], %38 {strides = array<i32>} : memref<2x1xf32, #tpu.memory_space<vmem>>, vector<2x1xf32>,
      %cst_34 = arith.constant 0.000000e+00 : f32
      %40 = vector.broadcast %cst_34 : f32 to vector<2x1xf32>
      %c0_35 = arith.constant 0 : index
      %c0_36 = arith.constant 0 : index
      %41 = vector.load %arg8[%c0_35, %c0_36] : memref<2x1xf32, #tpu.memory_space<vmem>>, vector<2x1xf32>
      tpu.vector_store %arg8[%c0_35, %c0_36], %40 {strides = array<i32>} : memref<2x1xf32, #tpu.memory_space<vmem>>, vector<2x1xf32>,
      %cst_37 = arith.constant 0.000000e+00 : f32
      %42 = vector.broadcast %cst_37 : f32 to vector<2x1xf32>
      %c0_38 = arith.constant 0 : index
      %c0_39 = arith.constant 0 : index
      %43 = vector.load %arg9[%c0_38, %c0_39] : memref<2x1xf32, #tpu.memory_space<vmem>>, vector<2x1xf32>
      tpu.vector_store %arg9[%c0_38, %c0_39], %42 {strides = array<i32>} : memref<2x1xf32, #tpu.memory_space<vmem>>, vector<2x1xf32>,
    } else {
    }
    %c0 = arith.constant 0 : index
    %c0_1 = arith.constant 0 : index
    %3 = vector.load %arg2[%c0, %c0_1] : memref<2x256xf32, #tpu.memory_space<vmem>>, vector<2x256xf32>
    %c0_2 = arith.constant 0 : index
    %c0_3 = arith.constant 0 : index
    %4 = vector.load %arg3[%c0_2, %c0_3] : memref<2x256xf32, #tpu.memory_space<vmem>>, vector<2x256xf32>
    %c0_4 = arith.constant 0 : index
    %c0_5 = arith.constant 0 : index
    %5 = vector.load %arg4[%c0_4, %c0_5] : memref<2x256xf32, #tpu.memory_space<vmem>>, vector<2x256xf32>
    %cst = arith.constant 1.000000e+00 : f32
    %6 = vector.broadcast %cst : f32 to vector<2x256xf32>
    %7 = arith.subf %6, %5 : vector<2x256xf32>
    %8 = math.absf %7 : vector<2x256xf32>
    %c0_6 = arith.constant 0 : index
    %c0_7 = arith.constant 0 : index
    %9 = vector.load %arg6[%c0_6, %c0_7] : memref<2x1xf32, #tpu.memory_space<vmem>>, vector<2x1xf32>
    %10 = arith.mulf %3, %8 : vector<2x256xf32>
    %cst_8 = arith.constant dense<0.000000e+00> : vector<2xf32>
    %11 = vector.multi_reduction <add>, %10, %cst_8 [1] : vector<2x256xf32> to vector<2xf32>
    %12 = vector.shape_cast %11 : vector<2xf32> to vector<2x1xf32>
    %13 = arith.addf %9, %12 : vector<2x1xf32>
    %c0_9 = arith.constant 0 : index
    %c0_10 = arith.constant 0 : index
    %14 = vector.load %arg6[%c0_9, %c0_10] : memref<2x1xf32, #tpu.memory_space<vmem>>, vector<2x1xf32>
    tpu.vector_store %arg6[%c0_9, %c0_10], %13 {strides = array<i32>} : memref<2x1xf32, #tpu.memory_space<vmem>>, vector<2x1xf32>,
    %c0_11 = arith.constant 0 : index
    %c0_12 = arith.constant 0 : index
    %15 = vector.load %arg7[%c0_11, %c0_12] : memref<2x1xf32, #tpu.memory_space<vmem>>, vector<2x1xf32>
    %16 = arith.addf %3, %8 : vector<2x256xf32>
    %cst_13 = arith.constant dense<0.000000e+00> : vector<2xf32>
    %17 = vector.multi_reduction <add>, %16, %cst_13 [1] : vector<2x256xf32> to vector<2xf32>
    %18 = vector.shape_cast %17 : vector<2xf32> to vector<2x1xf32>
    %19 = arith.addf %15, %18 : vector<2x1xf32>
    %c0_14 = arith.constant 0 : index
    %c0_15 = arith.constant 0 : index
    %20 = vector.load %arg7[%c0_14, %c0_15] : memref<2x1xf32, #tpu.memory_space<vmem>>, vector<2x1xf32>
    tpu.vector_store %arg7[%c0_14, %c0_15], %19 {strides = array<i32>} : memref<2x1xf32, #tpu.memory_space<vmem>>, vector<2x1xf32>,
    %c0_16 = arith.constant 0 : index
    %c0_17 = arith.constant 0 : index
    %21 = vector.load %arg8[%c0_16, %c0_17] : memref<2x1xf32, #tpu.memory_space<vmem>>, vector<2x1xf32>
    %22 = arith.mulf %4, %5 : vector<2x256xf32>
    %cst_18 = arith.constant dense<0.000000e+00> : vector<2xf32>
    %23 = vector.multi_reduction <add>, %22, %cst_18 [1] : vector<2x256xf32> to vector<2xf32>
    %24 = vector.shape_cast %23 : vector<2xf32> to vector<2x1xf32>
    %25 = arith.addf %21, %24 : vector<2x1xf32>
    %c0_19 = arith.constant 0 : index
    %c0_20 = arith.constant 0 : index
    %26 = vector.load %arg8[%c0_19, %c0_20] : memref<2x1xf32, #tpu.memory_space<vmem>>, vector<2x1xf32>
    tpu.vector_store %arg8[%c0_19, %c0_20], %25 {strides = array<i32>} : memref<2x1xf32, #tpu.memory_space<vmem>>, vector<2x1xf32>,
    %c0_21 = arith.constant 0 : index
    %c0_22 = arith.constant 0 : index
    %27 = vector.load %arg9[%c0_21, %c0_22] : memref<2x1xf32, #tpu.memory_space<vmem>>, vector<2x1xf32>
    %28 = arith.addf %4, %5 : vector<2x256xf32>
    %cst_23 = arith.constant dense<0.000000e+00> : vector<2xf32>
    %29 = vector.multi_reduction <add>, %28, %cst_23 [1] : vector<2x256xf32> to vector<2xf32>
    %30 = vector.shape_cast %29 : vector<2xf32> to vector<2x1xf32>
    %31 = arith.addf %27, %30 : vector<2x1xf32>
    %c0_24 = arith.constant 0 : index
    %c0_25 = arith.constant 0 : index
    %32 = vector.load %arg9[%c0_24, %c0_25] : memref<2x1xf32, #tpu.memory_space<vmem>>, vector<2x1xf32>
    tpu.vector_store %arg9[%c0_24, %c0_25], %31 {strides = array<i32>} : memref<2x1xf32, #tpu.memory_space<vmem>>, vector<2x1xf32>,
    %c0_i32_26 = arith.constant 0 : i32
    %33 = arith.cmpi eq, %arg1, %c0_i32_26 : i32
    %34 = arith.extui %33 : i1 to i32
    %c0_i32_27 = arith.constant 0 : i32
    %35 = arith.cmpi ne, %34, %c0_i32_27 : i32
    scf.if %35 {
      %c0_28 = arith.constant 0 : index
      %c0_29 = arith.constant 0 : index
      %36 = vector.load %arg6[%c0_28, %c0_29] : memref<2x1xf32, #tpu.memory_space<vmem>>, vector<2x1xf32>
      %cst_30 = arith.constant 2.000000e+00 : f32
      %37 = vector.broadcast %cst_30 : f32 to vector<2x1xf32>
      %38 = arith.mulf %37, %36 : vector<2x1xf32>
      %cst_31 = arith.constant 1.000000e+00 : f32
      %39 = vector.broadcast %cst_31 : f32 to vector<2x1xf32>
      %40 = arith.addf %38, %39 : vector<2x1xf32>
      %c0_32 = arith.constant 0 : index
      %c0_33 = arith.constant 0 : index
      %41 = vector.load %arg7[%c0_32, %c0_33] : memref<2x1xf32, #tpu.memory_space<vmem>>, vector<2x1xf32>
      %cst_34 = arith.constant 1.000000e+00 : f32
      %42 = vector.broadcast %cst_34 : f32 to vector<2x1xf32>
      %43 = arith.addf %41, %42 : vector<2x1xf32>
      %44 = arith.divf %40, %43 : vector<2x1xf32>
      %cst_35 = arith.constant 1.000000e+00 : f32
      %45 = vector.broadcast %cst_35 : f32 to vector<2x1xf32>
      %46 = arith.subf %45, %44 : vector<2x1xf32>
      %c0_36 = arith.constant 0 : index
      %c0_37 = arith.constant 0 : index
      %47 = vector.load %arg8[%c0_36, %c0_37] : memref<2x1xf32, #tpu.memory_space<vmem>>, vector<2x1xf32>
      %cst_38 = arith.constant 2.000000e+00 : f32
      %48 = vector.broadcast %cst_38 : f32 to vector<2x1xf32>
      %49 = arith.mulf %48, %47 : vector<2x1xf32>
      %cst_39 = arith.constant 1.000000e+00 : f32
      %50 = vector.broadcast %cst_39 : f32 to vector<2x1xf32>
      %51 = arith.addf %49, %50 : vector<2x1xf32>
      %c0_40 = arith.constant 0 : index
      %c0_41 = arith.constant 0 : index
      %52 = vector.load %arg9[%c0_40, %c0_41] : memref<2x1xf32, #tpu.memory_space<vmem>>, vector<2x1xf32>
      %cst_42 = arith.constant 1.000000e+00 : f32
      %53 = vector.broadcast %cst_42 : f32 to vector<2x1xf32>
      %54 = arith.addf %52, %53 : vector<2x1xf32>
      %55 = arith.divf %51, %54 : vector<2x1xf32>
      %cst_43 = arith.constant 1.000000e+00 : f32
      %56 = vector.broadcast %cst_43 : f32 to vector<2x1xf32>
      %57 = arith.subf %56, %55 : vector<2x1xf32>
      %58 = arith.addf %46, %57 : vector<2x1xf32>
      %c2_i32 = arith.constant 2 : i32
      %59 = arith.muli %arg0, %c2_i32 : i32
      %60 = tpu.iota {dimensions = array<i32: 0>} : vector<2x1xi32>
      %61 = vector.broadcast %59 : i32 to vector<2x1xi32>
      %62 = arith.addi %61, %60 : vector<2x1xi32>
      %c2_i32_44 = arith.constant 2 : i32
      %63 = vector.broadcast %c2_i32_44 : i32 to vector<2x1xi32>
      %64 = arith.cmpi slt, %62, %63 : vector<2x1xi32>
      %cst_45 = arith.constant 0.000000e+00 : f32
      %65 = vector.broadcast %cst_45 : f32 to vector<2x1xf32>
      %66 = arith.select %64, %58, %65 : vector<2x1xi1>, vector<2x1xf32>
      %67 = vector.shape_cast %66 : vector<2x1xf32> to vector<1x2x1xf32>
      %cst_46 = arith.constant dense<0.000000e+00> : vector<1xf32>
      %68 = vector.multi_reduction <add>, %67, %cst_46 [1, 2] : vector<1x2x1xf32> to vector<1xf32>
      %69 = vector.shape_cast %68 : vector<1xf32> to vector<1x1x1xf32>
      %70 = vector.extract %69[0, 0, 0] : f32 from vector<1x1x1xf32>
      %71 = vector.broadcast %70 : f32 to vector<1x1xf32>
      %72 = vector.shape_cast %71 : vector<1x1xf32> to vector<1x1xf32>
      %73 = vector.broadcast %72 : vector<1x1xf32> to vector<8x128xf32>
      %c0_47 = arith.constant 0 : index
      %c0_48 = arith.constant 0 : index
      %74 = vector.load %arg5[%c0_47, %c0_48] : memref<8x128xf32, #tpu.memory_space<vmem>>, vector<8x128xf32>
      tpu.vector_store %arg5[%c0_47, %c0_48], %73 {strides = array<i32>} : memref<8x128xf32, #tpu.memory_space<vmem>>, vector<8x128xf32>,
    } else {
    }
    return
  }
  func.func @transform_0(%arg0: i32, %arg1: i32) -> (i32, i32) {
    %c0_i32 = arith.constant 0 : i32
    return %arg0, %arg1 : i32, i32
  }
  func.func @transform_1(%arg0: i32, %arg1: i32) -> (i32, i32) {
    %c0_i32 = arith.constant 0 : i32
    return %arg0, %arg1 : i32, i32
  }
  func.func @transform_2(%arg0: i32, %arg1: i32) -> (i32, i32) {
    %c0_i32 = arith.constant 0 : i32
    return %arg0, %arg1 : i32, i32
  }
  func.func @transform_3(%arg0: i32, %arg1: i32) -> (i32, i32) {
    %c0_i32 = arith.constant 0 : i32
    %c0_i32_0 = arith.constant 0 : i32
    return %arg0, %c0_i32 : i32, i32
  }
}

</mosaic_0001>

<llo_original>
// kernel: tpu_custom_call.1
$region0: #{tpu_custom_call.1}
  #allocation0 [shape = 'u32[]', space=smem, size = 0x4, offset = 0x4, fixed_abs, tag = 'smem constant byte address 0x4 - core index']
  #allocation1 [shape = 'u32[144,128]{1,0:T(1,128)}', space=vmem, size = 0x12000, scoped, tag = 'internal scratch']
  #allocation2 [shape = 'f32[2,1]{1,0:T(2,128)}', space=vmem, size = 0x400, scoped, tag = 'scratch operand']
  #allocation3 [shape = 'f32[2,1]{1,0:T(2,128)}', space=vmem, size = 0x400, scoped, tag = 'scratch operand']
  #allocation4 [shape = 'f32[2,1]{1,0:T(2,128)}', space=vmem, size = 0x400, scoped, tag = 'scratch operand']
  #allocation5 [shape = 'f32[2,1]{1,0:T(2,128)}', space=vmem, size = 0x400, scoped, tag = 'scratch operand']
  %s0 = inlined_call_operand.hbm [shape: f32[2,256], index: 0, kind: input, shape index: {}]
  %s1 = inlined_call_operand.hbm [shape: f32[2,256], index: 1, kind: input, shape index: {}]
  %s2 = inlined_call_operand.hbm [shape: f32[2,256], index: 2, kind: input, shape index: {}]
  %s3 = inlined_call_operand.hbm [shape: f32[8,128], index: 3, kind: output, shape index: {}]
  %s4 = sld [smem:[#allocation0]]
  $region42: #{tpu_custom_call.1} parent=0
    _
  %s6 = ssub.s32 1, %s4
  %s7 = scalar_select 0, %s6, %s4
  $region1: #{tpu_custom_call.1} parent=0
    #allocation6 [shape = 'u8[2048]{0}', space=vmem, size = 0x800, scoped, tag = 'input window, operand 0, single buffered']
    #allocation7 [shape = 's32[1]{0}', space=sflag, size = 0x4, scoped, tag = 'scoped memory for tpu_custom_call.1']
    #allocation8 [shape = 's32[1]{0}', space=sflag, size = 0x4, scoped, tag = 'scoped memory for tpu_custom_call.1']
    #allocation9 [shape = 'u8[2048]{0}', space=vmem, size = 0x800, scoped, tag = 'input window, operand 1, single buffered']
    #allocation10 [shape = 's32[1]{0}', space=sflag, size = 0x4, scoped, tag = 'scoped memory for tpu_custom_call.1']
    #allocation11 [shape = 'u8[2048]{0}', space=vmem, size = 0x800, scoped, tag = 'input window, operand 2, single buffered']
    #allocation12 [shape = 'u8[4096]{0}', space=vmem, size = 0x1000, scoped, tag = 'output window, operand 0, single buffered']
    %8 = vsyncpa [#allocation7], 0
    %9 = vsyncpa [#allocation10], 0
    %10 = vsyncpa [#allocation8], 0
    // Predicated region
    $region2: #{tpu_custom_call.1} parent=1 // pred_check
      _
    $region3: #{tpu_custom_call.1} parent=1 // pred_check_branch
      %12 = sbr.rel (0) target = $region5
    $region4: #{tpu_custom_call.1} parent=1 // pred_region
      %s14 = ssub.s32 64, 64
      %15 = vsyncadd [#allocation7], %s14
      %s17 = sshll.u32 [#allocation6], 4
      %s18 = int_to_ptr.vmem [resolvable:$true] %s17
      %20 = dma.hbm_to_vmem [thread:$0]  %s0, 64, %s18, [#allocation7]
    $region5: #{tpu_custom_call.1} parent=1 // pred_fallthru
      _
    // Predicated region
    $region6: #{tpu_custom_call.1} parent=1 // pred_check
      _
    $region7: #{tpu_custom_call.1} parent=1 // pred_check_branch
      %22 = sbr.rel (0) target = $region9
    $region8: #{tpu_custom_call.1} parent=1 // pred_region
      %s24 = ssub.s32 64, 64
      %25 = vsyncadd [#allocation10], %s24
      %s27 = sshll.u32 [#allocation9], 4
      %s28 = int_to_ptr.vmem [resolvable:$true] %s27
      %30 = dma.hbm_to_vmem [thread:$0]  %s1, 64, %s28, [#allocation10]
    $region9: #{tpu_custom_call.1} parent=1 // pred_fallthru
      _
    // Predicated region
    $region10: #{tpu_custom_call.1} parent=1 // pred_check
      _
    $region11: #{tpu_custom_call.1} parent=1 // pred_check_branch
      %32 = sbr.rel (0) target = $region13
    $region12: #{tpu_custom_call.1} parent=1 // pred_region
      %s34 = ssub.s32 64, 64
      %35 = vsyncadd [#allocation10], %s34
      %s37 = sshll.u32 [#allocation11], 4
      %s38 = int_to_ptr.vmem [resolvable:$true] %s37
      %40 = dma.hbm_to_vmem [thread:$0]  %s2, 64, %s38, [#allocation10]
    $region13: #{tpu_custom_call.1} parent=1 // pred_fallthru
      _
    // Predicated region
    $region14: #{tpu_custom_call.1} parent=1 // pred_check
      _
    $region15: #{tpu_custom_call.1} parent=1 // pred_check_branch
      %42 = sbr.rel (0) target = $region17
    $region16: #{tpu_custom_call.1} parent=1 // pred_region
      %43 = dma.done [#allocation7], 64
    $region17: #{tpu_custom_call.1} parent=1 // pred_fallthru
      _
    // Predicated region
    $region18: #{tpu_custom_call.1} parent=1 // pred_check
      _
    $region19: #{tpu_custom_call.1} parent=1 // pred_check_branch
      %45 = sbr.rel (0) target = $region21
    $region20: #{tpu_custom_call.1} parent=1 // pred_region
      %46 = dma.done [#allocation10], 64
    $region21: #{tpu_custom_call.1} parent=1 // pred_fallthru
      _
    // Predicated region
    $region22: #{tpu_custom_call.1} parent=1 // pred_check
      _
    $region23: #{tpu_custom_call.1} parent=1 // pred_check_branch
      %48 = sbr.rel (0) target = $region25
    $region24: #{tpu_custom_call.1} parent=1 // pred_region
      %49 = dma.done [#allocation10], 64
    $region25: #{tpu_custom_call.1} parent=1 // pred_fallthru
      _
    %p50 = scmp.eq.s32.totalorder 0, 0
    // Predicated region
    $region26: #{tpu_custom_call.1} parent=1 // pred_check
      %p51 = pneg %p50
    $region27: #{tpu_custom_call.1} parent=1 // pred_check_branch
      %53 = sbr.rel (%p51) target = $region29
    $region28: #{tpu_custom_call.1} parent=1 // pred_region
      %vm54 = vcmask 1024
      %55 = vst.msk [vmem:[#allocation2] sm:$0x3] %vm54, 0.0
      %56 = vst.msk [vmem:[#allocation3] sm:$0x3] %vm54, 0.0
      %57 = vst.msk [vmem:[#allocation4] sm:$0x3] %vm54, 0.0
      %58 = vst.msk [vmem:[#allocation5] sm:$0x3] %vm54, 0.0
    $region29: #{tpu_custom_call.1} parent=1 // pred_fallthru
      _
    %v59 = vld [vmem:[#allocation6] sm:$0xf]
    %v60 = vld [vmem:[#allocation9] sm:$0xf]
    %v61 = vld [vmem:[#allocation11] sm:$0xf]
    %v62 = vsub.f32 1.0, %v61
    %v63 = vand.u32 2147483647, %v62
    %v64 = vld [vmem:[#allocation2] sm:$0x3]
    %v65 = vmul.f32 %v59, %v63
    %v68 = vunpack.c.l.s4 1983009808
    %v69 = vunpack.c.0.s8 %v68
    %v70 = vlaneseq
    %v71 = vshrl.u32 %v70, 7
    %v72 = vsub.s32 %v69, %v71
    %v73 = vrot.slane %v65, %v72
    %v74 = vcombine.high %v73, %v73
    %vm77 = vcmask 1041408
    %v78 = vsel %vm77, %v73, 0.0
    %v79 = vsel %vm77, %v74, 0.0
    %v80 = vadd.f32 %v78, %v79
    %81 = vadd.xlane.f32.xlu0 %v80
    %v82 = vpop.xlane.xlu0 %81
    %v83 = vadd.f32 %v64, %v82
    %vm84 = vcmask 1024
    %85 = vst.msk [vmem:[#allocation2] sm:$0x3] %vm84, %v83
    %v86 = vld [vmem:[#allocation3] sm:$0x3]
    %v87 = vadd.f32 %v59, %v63
    %v90 = vunpack.c.l.s4 1983009808
    %v91 = vunpack.c.0.s8 %v90
    %v92 = vlaneseq
    %v93 = vshrl.u32 %v92, 7
    %v94 = vsub.s32 %v91, %v93
    %v95 = vrot.slane %v87, %v94
    %v96 = vcombine.high %v95, %v95
    %v99 = vsel %vm77, %v95, 0.0
    %v100 = vsel %vm77, %v96, 0.0
    %v101 = vadd.f32 %v99, %v100
    %102 = vadd.xlane.f32.xlu0 %v101
    %v103 = vpop.xlane.xlu0 %102
    %v104 = vadd.f32 %v86, %v103
    %105 = vst.msk [vmem:[#allocation3] sm:$0x3] %vm84, %v104
    %v106 = vld [vmem:[#allocation4] sm:$0x3]
    %v107 = vmul.f32 %v60, %v61
    %v110 = vunpack.c.l.s4 1983009808
    %v111 = vunpack.c.0.s8 %v110
    %v112 = vlaneseq
    %v113 = vshrl.u32 %v112, 7
    %v114 = vsub.s32 %v111, %v113
    %v115 = vrot.slane %v107, %v114
    %v116 = vcombine.high %v115, %v115
    %v119 = vsel %vm77, %v115, 0.0
    %v120 = vsel %vm77, %v116, 0.0
    %v121 = vadd.f32 %v119, %v120
    %122 = vadd.xlane.f32.xlu0 %v121
    %v123 = vpop.xlane.xlu0 %122
    %v124 = vadd.f32 %v106, %v123
    %125 = vst.msk [vmem:[#allocation4] sm:$0x3] %vm84, %v124
    %v126 = vld [vmem:[#allocation5] sm:$0x3]
    %v127 = vadd.f32 %v60, %v61
    %v130 = vunpack.c.l.s4 1983009808
    %v131 = vunpack.c.0.s8 %v130
    %v132 = vlaneseq
    %v133 = vshrl.u32 %v132, 7
    %v134 = vsub.s32 %v131, %v133
    %v135 = vrot.slane %v127, %v134
    %v136 = vcombine.high %v135, %v135
    %v139 = vsel %vm77, %v135, 0.0
    %v140 = vsel %vm77, %v136, 0.0
    %v141 = vadd.f32 %v139, %v140
    %142 = vadd.xlane.f32.xlu0 %v141
    %v143 = vpop.xlane.xlu0 %142
    %v144 = vadd.f32 %v126, %v143
    %145 = vst.msk [vmem:[#allocation5] sm:$0x3] %vm84, %v144
    // Predicated region
    $region30: #{tpu_custom_call.1} parent=1 // pred_check
      %p146 = pneg %p50
    $region31: #{tpu_custom_call.1} parent=1 // pred_check_branch
      %148 = sbr.rel (%p146) target = $region33
    $region32: #{tpu_custom_call.1} parent=1 // pred_region
      %v149 = vld [vmem:[#allocation2] sm:$0x3]
      %v150 = vmul.f32 %v149, 2.0
      %v151 = vadd.f32 %v150, 1.0
      %v152 = vld [vmem:[#allocation3] sm:$0x3]
      %v153 = vadd.f32 %v152, 1.0
      %v154 = vrcp.pop %v153
      %v155 = vmul.f32 %v151, %v154
      %v156 = vsub.f32 1.0, %v155
      %v157 = vld [vmem:[#allocation4] sm:$0x3]
      %v158 = vmul.f32 %v157, 2.0
      %v159 = vadd.f32 %v158, 1.0
      %v160 = vld [vmem:[#allocation5] sm:$0x3]
      %v161 = vadd.f32 %v160, 1.0
      %v162 = vrcp.pop %v161
      %v163 = vmul.f32 %v159, %v162
      %v164 = vsub.f32 1.0, %v163
      %v165 = vadd.f32 %v156, %v164
      %s166 = smul.u32 0, 2
      %v167 = vlaneseq
      %v168 = vshrl.u32 %v167, 7
      %v169 = vstv %s166
      %v170 = vadd.s32 %v169, %v168
      %vm171 = vcmp.lt.s32.totalorder %v170, 2
      %v172 = vsel %vm171, %v165, 0.0
      %v173 = vsel %vm84, %v172, 0.0
      %174 = vadd.xlane.f32.xlu0 %v173
      %v175 = vpop.xlane.xlu0 %174
      %v176 = vrot.slane %v175, 4
      %v177 = vadd.f32 %v175, %v176
      %v178 = vrot.slane %v177, 2
      %v179 = vadd.f32 %v177, %v178
      %v180 = vrot.slane %v179, 1
      %v181 = vadd.f32 %v179, %v180
      %s182 = vtos %v181
      %v183 = vstv %s182
      %184 = vst [vmem:[#allocation12] sm:$0xff] %v183
    $region33: #{tpu_custom_call.1} parent=1 // pred_fallthru
      _
    // Predicated region
    $region34: #{tpu_custom_call.1} parent=1 // pred_check
      _
    $region35: #{tpu_custom_call.1} parent=1 // pred_check_branch
      %186 = sbr.rel (0) target = $region37
    $region36: #{tpu_custom_call.1} parent=1 // pred_region
      %s188 = ssub.s32 128, 128
      %189 = vsyncadd [#allocation8], %s188
      %s191 = sshll.u32 [#allocation12], 4
      %s192 = int_to_ptr.vmem [resolvable:$true] %s191
      %194 = dma.vmem_to_hbm [thread:$0]  %s192, 128, %s3, [#allocation8]
    $region37: #{tpu_custom_call.1} parent=1 // pred_fallthru
      _
    // Predicated region
    $region38: #{tpu_custom_call.1} parent=1 // pred_check
      _
    $region39: #{tpu_custom_call.1} parent=1 // pred_check_branch
      %196 = sbr.rel (0) target = $region41
    $region40: #{tpu_custom_call.1} parent=1 // pred_region
      %197 = dma.done [#allocation8], 128
    $region41: #{tpu_custom_call.1} parent=1 // pred_fallthru
      _
    %198 = vsyncpa [#allocation7], 1
    %199 = vsyncpa [#allocation10], 1
    %200 = vsyncpa [#allocation8], 1

</llo_original>
